<compile_context>
chip_gen: v6e
topology: v6e:2x2x1
jax: 0.10.0
libtpu: 0.0.40
codegen_flags: <defaults>
</compile_context>

<pallas_src>
import jax
import jax.numpy as jnp
from jax.experimental import pallas as pl
from jax.experimental.pallas import tpu as pltpu


def _conceptx_proj_kernel(h_ref, ct_ref, inv_ref, o_ref):
    """o = (h @ c^T) * inv_denom.

    h_ref:   (TN, D)  hidden row tile (ragged last block OK — garbage rows discarded)
    ct_ref:  (D, C)   pre-transposed concepts, resident (constant index_map)
    inv_ref: (1, C)   f32 per-concept 1/||c||^2, resident
    o_ref:   (TN, C)  f32 projections
    """
    # Large tile is the LHS in natural (m, k) orientation -> no big-tile transpose.
    num = jnp.dot(h_ref[...], ct_ref[...], preferred_element_type=jnp.float32)  # (TN, C) f32
    o_ref[...] = (num * inv_ref[...]).astype(o_ref.dtype)


def conceptx_activation(hidden_states, concept, denom_concept=None, *, tile_n=None):
    """JAX wrapper reproducing ConceptX.activation_func semantics.

    hidden_states: (..., D) — reshaped to (-1, D) like the PyTorch module
    concept:       (D,) single concept, or (C, D) batch of numerator concepts
    denom_concept: concept used in the denominator (defaults to `concept`); mirrors the
                   PyTorch concept_idx path where the denominator stays `concept`.
    returns:       (N,) float32 for a single concept, (C, N) float32 for a batch.
    """
    D = hidden_states.shape[-1]
    h = hidden_states.reshape(-1, D)
    N = h.shape[0]
    dtype = h.dtype
    itemsize = jnp.dtype(dtype).itemsize

    concept = jnp.asarray(concept)
    single = concept.ndim == 1
    c2d = concept.reshape(1, -1) if single else concept                 # (C, D)
    C = c2d.shape[0]

    # Denominator: module always uses the *passed* `concept` vector's squared norm.
    denom = c2d if denom_concept is None else jnp.asarray(denom_concept).reshape(-1, D)
    denom = denom.astype(jnp.float32)
    inv_denom = 1.0 / jnp.sum(denom * denom, axis=-1)                   # (1,) or (C,)
    inv_denom = jnp.broadcast_to(inv_denom, (C,)).reshape(1, C).astype(jnp.float32)

    # Pre-transpose the (tiny) concept matrix so the kernel matmul is h @ ct.
    # NOTE: concepts are cast to the hidden dtype (e.g. bf16) for the MXU; the f32
    # accumulation and f32 inv-denom multiply are kept exact.
    ct = c2d.astype(dtype).T                                            # (D, C)

    # ---- VMEM capacity (per-generation) and per-buffer byte budget
    try:
        vmem_cap = int(pltpu.get_tpu_info().vmem_capacity_bytes)
    except Exception:
        vmem_cap = 64 * 1024 * 1024                                     # conservative (v7x)
    budget = min(16 << 20, max(4 << 20, (vmem_cap - (24 << 20)) // 2))  # bytes per buffered step

    # ---- tile sizing: as big as the budget allows, multiple of 128 rows, full D in-block
    step_row_bytes = D * itemsize + C * 4                               # hidden row + f32 out row
    if tile_n is None:
        tile_n = (budget // max(1, step_row_bytes)) // 128 * 128
    tile_n = max(128, (int(tile_n) // 128) * 128)

    n_blocks_128 = pl.cdiv(N, 128)
    tile_n = min(tile_n, n_blocks_128 * 128)                            # don't exceed what N needs
    if N > 128:
        # Guarantee >= 2 grid steps when the data allows, so the row axis can be
        # sharded across both TensorCores on v7x (no effect on v5e/v6e).
        half = max(128, pl.cdiv(n_blocks_128, 2) * 128)
        tile_n = min(tile_n, half)
    tile_n = max(128, tile_n)

    grid = pl.cdiv(N, tile_n)
    n_out = grid * tile_n                                               # output padded to full tiles (tiny)

    # ---- VMEM limit: cover the double-buffered pipeline, stay under physical VMEM
    vmem_need = 2 * tile_n * step_row_bytes + D * C * itemsize + 4 * C + (6 << 20)
    hard_cap = max(32 << 20, vmem_cap - (8 << 20))
    vmem_limit_bytes = int(min(hard_cap, max(32 << 20, vmem_need)))

    cost = pl.CostEstimate(
        flops=2 * N * D * C,
        transcendentals=0,
        bytes_accessed=N * D * itemsize + n_out * C * 4 + D * C * itemsize,
    )

    out = pl.pallas_call(
        _conceptx_proj_kernel,
        out_shape=jax.ShapeDtypeStruct((n_out, C), jnp.float32),
        grid_spec=pltpu.PrefetchScalarGridSpec(
            num_scalar_prefetch=0,
            grid=(grid,),
            in_specs=[
                pl.BlockSpec((tile_n, D), lambda i: (i, 0)),   # hidden row tile (ragged last block OK)
                pl.BlockSpec((D, C), lambda i: (0, 0)),        # concepts^T, fetched once, resident
                pl.BlockSpec((1, C), lambda i: (0, 0)),        # 1/||c||^2 per concept, resident
            ],
            out_specs=pl.BlockSpec((tile_n, C), lambda i: (i, 0)),
        ),
        compiler_params=pltpu.CompilerParams(
            dimension_semantics=("parallel",),
            vmem_limit_bytes=vmem_limit_bytes,
        ),
        cost_estimate=cost,
    )(h, ct, inv_denom)

    proj = out[:N]                      # drop garbage rows from the ragged last block
    if single:
        return proj.reshape(-1)         # (N,)
    return proj.T                       # (C, N)


if __name__ == "__main__":
    # Small shapes consistent with the module's activation_func:
    # tokens (batch=2, seq=8), d_model=32 -> hidden_states (16, 32); 4 clustered concepts.
    batch, seq, d_model = 2, 8, 32
    n_clusters = 4

    key = jax.random.PRNGKey(0)
    k_h, k_c, k_cx = jax.random.split(key, 3)

    hidden_states = jax.random.normal(k_h, (batch, seq, d_model), dtype=jnp.float32)
    concept = jax.random.normal(k_c, (d_model,), dtype=jnp.float32)
    concepts = jax.random.normal(k_cx, (n_clusters, d_model), dtype=jnp.float32)

    h2d = hidden_states.reshape(-1, d_model)          # (-1, d_model), as in PyTorch

    denom = (concept * concept).sum()

    # Path 1: explicit concept vector (concept_idx is None).
    res = jax.block_until_ready(conceptx_activation(h2d, concept))
    ref = (h2d * concept).sum(-1) / denom
    assert res.shape == (batch * seq,)
    assert jnp.allclose(res, ref, rtol=1e-5, atol=1e-5)

    # Path 2: concept_idx selects the numerator; denominator still uses `concept`
    # (exactly matching the PyTorch code).
    concept_idx = 1
    res_idx = jax.block_until_ready(
        conceptx_activation(h2d, concepts[concept_idx], denom_concept=concept))
    ref_idx = (h2d * concepts[concept_idx]).sum(-1) / denom
    assert jnp.allclose(res_idx, ref_idx, rtol=1e-5, atol=1e-5)

    # Path 3: batched concepts — all projections in ONE pass over hidden_states.
    res_all = jax.block_until_ready(
        conceptx_activation(h2d, concepts, denom_concept=concept))   # (C, N)
    ref_all = (h2d @ concepts.T).T / denom
    assert res_all.shape == (n_clusters, batch * seq)
    assert jnp.allclose(res_all, ref_all, rtol=1e-5, atol=1e-5)

    # Ragged / multi-step grid: N not a multiple of tile_n (no wrapper-side padding;
    # garbage rows of the last block must be discarded correctly).
    h_big = jax.random.normal(jax.random.PRNGKey(1), (300, d_model), dtype=jnp.float32)
    ref_big = (h_big * concept).sum(-1) / denom
    res_big = jax.block_until_ready(conceptx_activation(h_big, concept, tile_n=128))  # grid=3, last block ragged
    assert res_big.shape == (300,)
    assert jnp.allclose(res_big, ref_big, rtol=1e-5, atol=1e-5)
    res_big_auto = jax.block_until_ready(conceptx_activation(h_big, concept))         # auto tiling, grid>=2
    assert jnp.allclose(res_big_auto, ref_big, rtol=1e-5, atol=1e-5)

    print("KERNEL_OK")
</pallas_src>

<mosaic_0001>
module attributes {stable_mosaic.version = 11 : i64} {
  func.func @_conceptx_proj_kernel(%arg0: i32, %arg1: memref<128x32xf32, #tpu.memory_space<vmem>>, %arg2: memref<32x1xf32, #tpu.memory_space<vmem>>, %arg3: memref<1x1xf32, #tpu.memory_space<vmem>>, %arg4: memref<128x1xf32, #tpu.memory_space<vmem>>) attributes {dimension_semantics = [#tpu.dimension_semantics<parallel>], iteration_bounds = array<i64: 1>, scalar_prefetch = 0 : i64, scratch_operands = 0 : i64, tpu.core_type = #tpu.core_type<tc>, window_params = [{transform_indices = @transform_0, window_bounds = array<i64: 128, 32>}, {pipeline_mode = #tpu.pipeline_mode<synchronous>, transform_indices = @transform_1, window_bounds = array<i64: 32, 1>}, {pipeline_mode = #tpu.pipeline_mode<synchronous>, transform_indices = @transform_2, window_bounds = array<i64: 1, 1>}, {transform_indices = @transform_3, window_bounds = array<i64: 128, 1>}]} {
    %c0 = arith.constant 0 : index
    %c0_0 = arith.constant 0 : index
    %0 = vector.load %arg1[%c0, %c0_0] : memref<128x32xf32, #tpu.memory_space<vmem>>, vector<128x32xf32>
    %c0_1 = arith.constant 0 : index
    %c0_2 = arith.constant 0 : index
    %1 = vector.load %arg2[%c0_1, %c0_2] : memref<32x1xf32, #tpu.memory_space<vmem>>, vector<32x1xf32>
    %cst = arith.constant dense<0.000000e+00> : vector<128x1xf32>
    %2 = tpu.matmul %0, %1, %cst {dimension_numbers = #tpu.dot_dimension_numbers<[1], [0], [0], [1], [0, 0, 1, 1], [], []>} : vector<128x32xf32>, vector<32x1xf32>, vector<128x1xf32> -> vector<128x1xf32>
    %c0_3 = arith.constant 0 : index
    %c0_4 = arith.constant 0 : index
    %3 = vector.load %arg3[%c0_3, %c0_4] : memref<1x1xf32, #tpu.memory_space<vmem>>, vector<1x1xf32>
    %4 = vector.broadcast %3 : vector<1x1xf32> to vector<128x1xf32>
    %5 = arith.mulf %2, %4 : vector<128x1xf32>
    %c0_5 = arith.constant 0 : index
    %c0_6 = arith.constant 0 : index
    %6 = vector.load %arg4[%c0_5, %c0_6] : memref<128x1xf32, #tpu.memory_space<vmem>>, vector<128x1xf32>
    tpu.vector_store %arg4[%c0_5, %c0_6], %5 {strides = array<i32>} : memref<128x1xf32, #tpu.memory_space<vmem>>, vector<128x1xf32>,
    return
  }
  func.func @transform_0(%arg0: i32) -> (i32, i32) {
    %c0_i32 = arith.constant 0 : i32
    %c0_i32_0 = arith.constant 0 : i32
    return %arg0, %c0_i32 : i32, i32
  }
  func.func @transform_1(%arg0: i32) -> (i32, i32) {
    %c0_i32 = arith.constant 0 : i32
    %c0_i32_0 = arith.constant 0 : i32
    %c0_i32_1 = arith.constant 0 : i32
    return %c0_i32, %c0_i32_0 : i32, i32
  }
  func.func @transform_2(%arg0: i32) -> (i32, i32) {
    %c0_i32 = arith.constant 0 : i32
    %c0_i32_0 = arith.constant 0 : i32
    %c0_i32_1 = arith.constant 0 : i32
    return %c0_i32, %c0_i32_0 : i32, i32
  }
  func.func @transform_3(%arg0: i32) -> (i32, i32) {
    %c0_i32 = arith.constant 0 : i32
    %c0_i32_0 = arith.constant 0 : i32
    return %arg0, %c0_i32 : i32, i32
  }
}

</mosaic_0001>

<llo_original>
// kernel: tpu_custom_call.1
$region0: #{tpu_custom_call.1}
  #allocation0 [shape = 'u32[]', space=smem, size = 0x4, offset = 0x4, fixed_abs, tag = 'smem constant byte address 0x4 - core index']
  #allocation1 [shape = 'u32[144,128]{1,0:T(1,128)}', space=vmem, size = 0x12000, scoped, tag = 'internal scratch']
  #allocation2 [shape = 'f32[1,1]{1,0:T(1,128)S(1)}', space=vmem, size = 0x200, scoped, tag = 'scoped memory for tpu_custom_call.1']
  %s0 = inlined_call_operand.vmem [shape: f32[16,32], index: 0, kind: input, shape index: {}]
  %s1 = inlined_call_operand.vmem [shape: f32[32,1], index: 1, kind: input, shape index: {}]
  %s2 = inlined_call_operand.<no memory space> [shape: f32[1,1], index: 2, kind: input, shape index: {}]
  %s3 = inlined_call_operand.vmem [shape: f32[128,1], index: 3, kind: output, shape index: {}]
  %s4 = sld [smem:[#allocation0]]
  $region22: #{tpu_custom_call.1} parent=0
    _
  %s6 = ssub.s32 1, %s4
  %s7 = scalar_select 0, %s6, %s4
  %v8 = vstv %s2
  %9 = vst [vmem:[#allocation2] sm:$0x1] %v8
  // Predicated region
  $region2: #{tpu_custom_call.1} parent=0 // pred_check
    _
  $region3: #{tpu_custom_call.1} parent=0 // pred_check_branch
    %11 = sbr.rel (0) target = $region5
  $region4: #{tpu_custom_call.1} parent=0 // pred_region
    _
  $region5: #{tpu_custom_call.1} parent=0 // pred_fallthru
    _
  // Predicated region
  $region6: #{tpu_custom_call.1} parent=0 // pred_check
    _
  $region7: #{tpu_custom_call.1} parent=0 // pred_check_branch
    %13 = sbr.rel (0) target = $region9
  $region8: #{tpu_custom_call.1} parent=0 // pred_region
    _
  $region9: #{tpu_custom_call.1} parent=0 // pred_fallthru
    _
  // Predicated region
  $region10: #{tpu_custom_call.1} parent=0 // pred_check
    _
  $region11: #{tpu_custom_call.1} parent=0 // pred_check_branch
    %15 = sbr.rel (0) target = $region13
  $region12: #{tpu_custom_call.1} parent=0 // pred_region
    _
  $region13: #{tpu_custom_call.1} parent=0 // pred_fallthru
    _
  %v16 = vld [vmem:[%s0] sm:$0xff]
  %v17 = vld [vmem:[%s0 + $0x8] sm:$0xff]
  %v18 = vld [vmem:[%s0 + $0x10] sm:$0xff]
  %v19 = vld [vmem:[%s0 + $0x18] sm:$0xff]
  %v20 = vld [vmem:[%s0 + $0x20] sm:$0xff]
  %v21 = vld [vmem:[%s0 + $0x28] sm:$0xff]
  %v22 = vld [vmem:[%s0 + $0x30] sm:$0xff]
  %v23 = vld [vmem:[%s0 + $0x38] sm:$0xff]
  %v24 = vld [vmem:[%s0 + $0x40] sm:$0xff]
  %v25 = vld [vmem:[%s0 + $0x48] sm:$0xff]
  %v26 = vld [vmem:[%s0 + $0x50] sm:$0xff]
  %v27 = vld [vmem:[%s0 + $0x58] sm:$0xff]
  %v28 = vld [vmem:[%s0 + $0x60] sm:$0xff]
  %v29 = vld [vmem:[%s0 + $0x68] sm:$0xff]
  %v30 = vld [vmem:[%s0 + $0x70] sm:$0xff]
  %v31 = vld [vmem:[%s0 + $0x78] sm:$0xff]
  %v32 = vld [vmem:[%s1] sm:$0xff]
  %v33 = vld [vmem:[%s1 + $0x8] sm:$0xff]
  %v34 = vld [vmem:[%s1 + $0x10] sm:$0xff]
  %v35 = vld [vmem:[%s1 + $0x18] sm:$0xff]
  %vm36 = vcmask 261120
  %v38 = vsel %vm36, %v16, 0
  %v41 = vsel %vm36, %v17, 0
  %v44 = vsel %vm36, %v18, 0
  %v47 = vsel %vm36, %v19, 0
  %v50 = vsel %vm36, %v20, 0
  %v53 = vsel %vm36, %v21, 0
  %v56 = vsel %vm36, %v22, 0
  %v59 = vsel %vm36, %v23, 0
  %v62 = vsel %vm36, %v24, 0
  %v65 = vsel %vm36, %v25, 0
  %v68 = vsel %vm36, %v26, 0
  %v71 = vsel %vm36, %v27, 0
  %v74 = vsel %vm36, %v28, 0
  %v77 = vsel %vm36, %v29, 0
  %v80 = vsel %vm36, %v30, 0
  %v83 = vsel %vm36, %v31, 0
  %85 = vmatprep.subr.mxu0 0.0
  %86 = vmatpush1.msra.mxu0 0.0
  %87 = vmatprep.subr.mxu0 0.0
  %88 = vmatpush1.msra.mxu0 0.0
  %89 = vmatprep.subr.mxu0 0.0
  %90 = vmatpush1.msra.mxu0 0.0
  %91 = vmatprep.subr.mxu0 0.0
  %92 = vmatpush1.msra.mxu0 0.0
  %93 = vmatprep.subr.mxu0 0.0
  %94 = vmatpush1.msra.mxu0 0.0
  %95 = vmatprep.subr.mxu0 0.0
  %96 = vmatpush1.msra.mxu0 0.0
  %97 = vmatprep.subr.mxu0 0.0
  %98 = vmatpush1.msra.mxu0 0.0
  %99 = vmatprep.subr.mxu0 0.0
  %100 = vmatpush1.msra.mxu0 0.0
  %101 = vmatprep.subr.mxu0 0.0
  %102 = vmatpush1.msra.mxu0 0.0
  %103 = vmatprep.subr.mxu0 0.0
  %104 = vmatpush1.msra.mxu0 0.0
  %105 = vmatprep.subr.mxu0 0.0
  %106 = vmatpush1.msra.mxu0 0.0
  %107 = vmatprep.subr.mxu0 0.0
  %108 = vmatpush1.msra.mxu0 0.0
  %109 = vmatprep.subr.mxu0 0.0
  %110 = vmatpush1.msra.mxu0 %v35
  %111 = vmatprep.subr.mxu0 0.0
  %112 = vmatpush1.msra.mxu0 %v34
  %113 = vmatprep.subr.mxu0 0.0
  %114 = vmatpush1.msra.mxu0 %v33
  %115 = vmatprep.subr.mxu0 0.0
  %116 = vmatpush1.msra.mxu0 %v32
  %117 = vmatprep.subr.mxu0 0.0
  %118 = vmatpush2.msra.mxu0 0.0
  %119 = vmatprep.subr.mxu0 0.0
  %120 = vmatpush2.msra.mxu0 0.0
  %121 = vmatprep.subr.mxu0 0.0
  %122 = vmatpush2.msra.mxu0 0.0
  %123 = vmatprep.subr.mxu0 0.0
  %124 = vmatpush2.msra.mxu0 0.0
  %125 = vmatprep.subr.mxu0 0.0
  %126 = vmatpush2.msra.mxu0 0.0
  %127 = vmatprep.subr.mxu0 0.0
  %128 = vmatpush2.msra.mxu0 0.0
  %129 = vmatprep.subr.mxu0 0.0
  %130 = vmatpush2.msra.mxu0 0.0
  %131 = vmatprep.subr.mxu0 0.0
  %132 = vmatpush2.msra.mxu0 0.0
  %133 = vmatprep.subr.mxu0 0.0
  %134 = vmatpush2.msra.mxu0 0.0
  %135 = vmatprep.subr.mxu0 0.0
  %136 = vmatpush2.msra.mxu0 0.0
  %137 = vmatprep.subr.mxu0 0.0
  %138 = vmatpush2.msra.mxu0 0.0
  %139 = vmatprep.subr.mxu0 0.0
  %140 = vmatpush2.msra.mxu0 0.0
  %141 = vmatprep.subr.mxu0 0.0
  %142 = vmatpush2.msra.mxu0 0.0
  %143 = vmatprep.subr.mxu0 0.0
  %144 = vmatpush2.msra.mxu0 0.0
  %145 = vmatprep.subr.mxu0 0.0
  %146 = vmatpush2.msra.mxu0 0.0
  %147 = vmatprep.subr.mxu0 0.0
  %148 = vmatpush2.msra.mxu0 0.0
  %149 = vmatprep.mubr.f32.mxu0 0.0
  %150 = vmatmul.mubr.f32.gmra.mxu0 %v38
  %v151 = vpop.f32.mrf.mxu0
  %v152 = vadd.f32 0.0, %v151
  %v153 = vpop.f32.mrf.mxu0
  %154 = vmatprep.mubr.f32.mxu0 0.0
  %155 = vmatmul.mubr.f32.gmra.mxu0 %v41
  %v156 = vpop.f32.mrf.mxu0
  %v157 = vadd.f32 0.0, %v156
  %v158 = vpop.f32.mrf.mxu0
  %159 = vmatprep.mubr.f32.mxu0 0.0
  %160 = vmatmul.mubr.f32.gmra.mxu0 %v44
  %v161 = vpop.f32.mrf.mxu0
  %v162 = vadd.f32 0.0, %v161
  %v163 = vpop.f32.mrf.mxu0
  %164 = vmatprep.mubr.f32.mxu0 0.0
  %165 = vmatmul.mubr.f32.gmra.mxu0 %v47
  %v166 = vpop.f32.mrf.mxu0
  %v167 = vadd.f32 0.0, %v166
  %v168 = vpop.f32.mrf.mxu0
  %169 = vmatprep.mubr.f32.mxu0 0.0
  %170 = vmatmul.mubr.f32.gmra.mxu0 %v50
  %v171 = vpop.f32.mrf.mxu0
  %v172 = vadd.f32 0.0, %v171
  %v173 = vpop.f32.mrf.mxu0
  %174 = vmatprep.mubr.f32.mxu0 0.0
  %175 = vmatmul.mubr.f32.gmra.mxu0 %v53
  %v176 = vpop.f32.mrf.mxu0
  %v177 = vadd.f32 0.0, %v176
  %v178 = vpop.f32.mrf.mxu0
  %179 = vmatprep.mubr.f32.mxu0 0.0
  %180 = vmatmul.mubr.f32.gmra.mxu0 %v56
  %v181 = vpop.f32.mrf.mxu0
  %v182 = vadd.f32 0.0, %v181
  %v183 = vpop.f32.mrf.mxu0
  %184 = vmatprep.mubr.f32.mxu0 0.0
  %185 = vmatmul.mubr.f32.gmra.mxu0 %v59
  %v186 = vpop.f32.mrf.mxu0
  %v187 = vadd.f32 0.0, %v186
  %v188 = vpop.f32.mrf.mxu0
  %189 = vmatprep.mubr.f32.mxu0 0.0
  %190 = vmatmul.mubr.f32.gmra.mxu0 %v62
  %v191 = vpop.f32.mrf.mxu0
  %v192 = vadd.f32 0.0, %v191
  %v193 = vpop.f32.mrf.mxu0
  %194 = vmatprep.mubr.f32.mxu0 0.0
  %195 = vmatmul.mubr.f32.gmra.mxu0 %v65
  %v196 = vpop.f32.mrf.mxu0
  %v197 = vadd.f32 0.0, %v196
  %v198 = vpop.f32.mrf.mxu0
  %199 = vmatprep.mubr.f32.mxu0 0.0
  %200 = vmatmul.mubr.f32.gmra.mxu0 %v68
  %v201 = vpop.f32.mrf.mxu0
  %v202 = vadd.f32 0.0, %v201
  %v203 = vpop.f32.mrf.mxu0
  %204 = vmatprep.mubr.f32.mxu0 0.0
  %205 = vmatmul.mubr.f32.gmra.mxu0 %v71
  %v206 = vpop.f32.mrf.mxu0
  %v207 = vadd.f32 0.0, %v206
  %v208 = vpop.f32.mrf.mxu0
  %209 = vmatprep.mubr.f32.mxu0 0.0
  %210 = vmatmul.mubr.f32.gmra.mxu0 %v74
  %v211 = vpop.f32.mrf.mxu0
  %v212 = vadd.f32 0.0, %v211
  %v213 = vpop.f32.mrf.mxu0
  %214 = vmatprep.mubr.f32.mxu0 0.0
  %215 = vmatmul.mubr.f32.gmra.mxu0 %v77
  %v216 = vpop.f32.mrf.mxu0
  %v217 = vadd.f32 0.0, %v216
  %v218 = vpop.f32.mrf.mxu0
  %219 = vmatprep.mubr.f32.mxu0 0.0
  %220 = vmatmul.mubr.f32.gmra.mxu0 %v80
  %v221 = vpop.f32.mrf.mxu0
  %v222 = vadd.f32 0.0, %v221
  %v223 = vpop.f32.mrf.mxu0
  %224 = vmatprep.mubr.f32.mxu0 0.0
  %225 = vmatmul.mubr.f32.gmra.mxu0 %v83
  %v226 = vpop.f32.mrf.mxu0
  %v227 = vadd.f32 0.0, %v226
  %v228 = vpop.f32.mrf.mxu0
  %229 = vdwg.mxu0
  %v230 = vld [vmem:[#allocation2] sm:$0x1]
  %v232 = vlaneseq
  %v233 = vshrl.u32 %v232, 7
  %v234 = vsub.s32 0, %v233
  %v235 = vrot.slane %v230, %v234
  %v237 = vmul.f32 %v152, %v235
  %v238 = vmul.f32 %v157, %v235
  %v239 = vmul.f32 %v162, %v235
  %v240 = vmul.f32 %v167, %v235
  %v241 = vmul.f32 %v172, %v235
  %v242 = vmul.f32 %v177, %v235
  %v243 = vmul.f32 %v182, %v235
  %v244 = vmul.f32 %v187, %v235
  %v245 = vmul.f32 %v192, %v235
  %v246 = vmul.f32 %v197, %v235
  %v247 = vmul.f32 %v202, %v235
  %v248 = vmul.f32 %v207, %v235
  %v249 = vmul.f32 %v212, %v235
  %v250 = vmul.f32 %v217, %v235
  %v251 = vmul.f32 %v222, %v235
  %v252 = vmul.f32 %v227, %v235
  %vm253 = vcmask 7168
  %254 = vst.msk [vmem:[%s3] sm:$0xff] %vm253, %v237
  %255 = vst.msk [vmem:[%s3 + $0x8] sm:$0xff] %vm253, %v238
  %256 = vst.msk [vmem:[%s3 + $0x10] sm:$0xff] %vm253, %v239
  %257 = vst.msk [vmem:[%s3 + $0x18] sm:$0xff] %vm253, %v240
  %258 = vst.msk [vmem:[%s3 + $0x20] sm:$0xff] %vm253, %v241
  %259 = vst.msk [vmem:[%s3 + $0x28] sm:$0xff] %vm253, %v242
  %260 = vst.msk [vmem:[%s3 + $0x30] sm:$0xff] %vm253, %v243
  %261 = vst.msk [vmem:[%s3 + $0x38] sm:$0xff] %vm253, %v244
  %262 = vst.msk [vmem:[%s3 + $0x40] sm:$0xff] %vm253, %v245
  %263 = vst.msk [vmem:[%s3 + $0x48] sm:$0xff] %vm253, %v246
  %264 = vst.msk [vmem:[%s3 + $0x50] sm:$0xff] %vm253, %v247
  %265 = vst.msk [vmem:[%s3 + $0x58] sm:$0xff] %vm253, %v248
  %266 = vst.msk [vmem:[%s3 + $0x60] sm:$0xff] %vm253, %v249
  %267 = vst.msk [vmem:[%s3 + $0x68] sm:$0xff] %vm253, %v250
  %268 = vst.msk [vmem:[%s3 + $0x70] sm:$0xff] %vm253, %v251
  %269 = vst.msk [vmem:[%s3 + $0x78] sm:$0xff] %vm253, %v252
  // Predicated region
  $region14: #{tpu_custom_call.1} parent=0 // pred_check
    _
  $region15: #{tpu_custom_call.1} parent=0 // pred_check_branch
    %271 = sbr.rel (0) target = $region17
  $region16: #{tpu_custom_call.1} parent=0 // pred_region
    _
  $region17: #{tpu_custom_call.1} parent=0 // pred_fallthru
    _
  // Predicated region
  $region18: #{tpu_custom_call.1} parent=0 // pred_check
    _
  $region19: #{tpu_custom_call.1} parent=0 // pred_check_branch
    %273 = sbr.rel (0) target = $region21
  $region20: #{tpu_custom_call.1} parent=0 // pred_region
    _
  $region21: #{tpu_custom_call.1} parent=0 // pred_fallthru
    _

</llo_original>
